<compile_context>
chip_gen: v5e
topology: v5e:2x2
jax: 0.10.0
libtpu: 0.0.40
codegen_flags: <defaults>
</compile_context>

<pallas_src>
import jax
import jax.numpy as jnp
from jax.experimental import pallas as pl
from jax.experimental.pallas import tpu as pltpu


def _round_up(a: int, b: int) -> int:
    return (a + b - 1) // b * b


def _unembed_kernel(x_ref, w_ref, b_ref, o_ref):
    # x_ref: (TM, d_model)   one row tile of activations, full K
    # w_ref: (d_model, TN)   one vocab tile of W_U
    # b_ref: (1, TN)         one vocab tile of b_U (f32)
    # o_ref: (TM, TN)
    acc = jnp.dot(x_ref[...], w_ref[...], preferred_element_type=jnp.float32)
    o_ref[...] = (acc + b_ref[...]).astype(o_ref.dtype)


def unembed(
    x,
    W_U,
    b_U,
    *,
    tn: int = 512,
    tm: int = 256,
    compute_dtype=None,
    out_dtype=None,
    x_resident_budget_bytes: int = 12 * 1024 * 1024,
):
    """x: [batch, position, d_model] -> [batch, position, d_vocab]."""
    batch, seq, d_model = x.shape
    d_model_w, d_vocab = W_U.shape
    assert d_model == d_model_w, "W_U first dim must equal d_model"
    assert b_U.shape == (d_vocab,)

    out_dtype = out_dtype if out_dtype is not None else x.dtype

    M = batch * seq
    x2d = x.reshape(M, d_model)
    if compute_dtype is not None:
        x2d = x2d.astype(compute_dtype)
        W_U = W_U.astype(compute_dtype)
    b2d = b_U.astype(jnp.float32).reshape(1, d_vocab)

    # --- vocab tiling (pad to a multiple of tn; slice the output back) ---
    tn = min(tn, _round_up(d_vocab, 128))
    v_pad = _round_up(d_vocab, tn)
    if v_pad != d_vocab:
        W_U = jnp.pad(W_U, ((0, 0), (0, v_pad - d_vocab)))
        b2d = jnp.pad(b2d, ((0, 0), (0, v_pad - d_vocab)))

    # --- M tiling: keep x resident when it comfortably fits (incl. double-buffer),
    #     otherwise tile rows (needed on v7x's 64 MiB VMEM / large prefill M) ---
    x_itemsize = jnp.dtype(x2d.dtype).itemsize
    x_resident = 2 * M * d_model * x_itemsize <= x_resident_budget_bytes
    if x_resident:
        tm_eff = M                  # block dim == full array dim -> no (8,...) constraint
        m_pad = M
    else:
        tm_eff = max(8, _round_up(min(tm, M), 8))
        m_pad = _round_up(M, tm_eff)
        if m_pad != M:
            x2d = jnp.pad(x2d, ((0, m_pad - M), (0, 0)))

    n_v = v_pad // tn
    n_m = m_pad // tm_eff

    # --- explicit VMEM budget: double-buffered x / W / bias / out tiles + headroom ---
    w_itemsize = jnp.dtype(W_U.dtype).itemsize
    o_itemsize = jnp.dtype(out_dtype).itemsize
    need = (
        2 * tm_eff * d_model * x_itemsize
        + 2 * d_model * tn * w_itemsize
        + 2 * 8 * tn * 4
        + 2 * tm_eff * tn * o_itemsize
    )
    vmem_limit = min(max(2 * need + (2 << 20), 8 << 20), 100 << 20)

    out2d = pl.pallas_call(
        _unembed_kernel,
        out_shape=jax.ShapeDtypeStruct((m_pad, v_pad), out_dtype),
        grid_spec=pltpu.PrefetchScalarGridSpec(
            num_scalar_prefetch=0,
            # vocab is the OUTER (slow) axis -> each W_U tile read from HBM once;
            # M is the INNER (fast) axis -> row tiles stream under a resident W tile.
            grid=(n_v, n_m),
            in_specs=[
                pl.BlockSpec((tm_eff, d_model), lambda j, i: (i, 0)),  # activations
                pl.BlockSpec((d_model, tn), lambda j, i: (0, j)),      # W_U vocab tile
                pl.BlockSpec((1, tn), lambda j, i: (0, j)),            # b_U vocab tile
            ],
            out_specs=pl.BlockSpec((tm_eff, tn), lambda j, i: (i, j)),
        ),
        compiler_params=pltpu.CompilerParams(
            dimension_semantics=("parallel", "parallel"),
            vmem_limit_bytes=int(vmem_limit),
        ),
    )(x2d, W_U, b2d)

    out2d = out2d[:M, :d_vocab]
    return out2d.reshape(batch, seq, d_vocab)


if __name__ == "__main__":
    # Small, Config-consistent shapes: batch=2, position=8, d_model=32, d_vocab=256
    batch, seq, d_model, d_vocab = 2, 8, 32, 256
    init_range = 0.02

    key = jax.random.PRNGKey(0)
    kx, kw = jax.random.split(key)

    x = jax.random.normal(kx, (batch, seq, d_model), dtype=jnp.float32)
    # nn.init.normal_(W_U, std=init_range); b_U = zeros
    W_U = init_range * jax.random.normal(kw, (d_model, d_vocab), dtype=jnp.float32)
    b_U = jnp.zeros((d_vocab,), dtype=jnp.float32)

    # 1) f32, resident-activation path (single vocab/M tile).
    out = jax.block_until_ready(unembed(x, W_U, b_U))
    ref = x @ W_U + b_U
    assert out.shape == (batch, seq, d_vocab)
    assert jnp.allclose(out, ref, atol=1e-5, rtol=1e-5)

    # 2) Padding + 2-axis (vocab-outer, M-inner) tiling path with a non-128-multiple vocab.
    d_vocab2 = 250
    W2 = W_U[:, :d_vocab2]
    b2 = b_U[:d_vocab2]
    out2 = jax.block_until_ready(
        unembed(x, W2, b2, tn=128, tm=8, x_resident_budget_bytes=0)
    )
    ref2 = x @ W2 + b2
    assert out2.shape == (batch, seq, d_vocab2)
    assert jnp.allclose(out2, ref2, atol=1e-5, rtol=1e-5)

    # 3) bf16 weights/activations (halves dominant W_U HBM traffic), f32 MXU accumulation.
    out3 = jax.block_until_ready(unembed(x, W_U, b_U, compute_dtype=jnp.bfloat16))
    ref3 = (
        x.astype(jnp.bfloat16).astype(jnp.float32)
        @ W_U.astype(jnp.bfloat16).astype(jnp.float32)
        + b_U
    )
    assert out3.shape == (batch, seq, d_vocab)
    assert jnp.allclose(out3, ref3, atol=2e-2, rtol=2e-2)

    print("KERNEL_OK")
</pallas_src>

<mosaic_0001>
module attributes {stable_mosaic.version = 11 : i64} {
  func.func @_unembed_kernel(%arg0: i32, %arg1: i32, %arg2: memref<16x32xf32, #tpu.memory_space<vmem>>, %arg3: memref<32x256xf32, #tpu.memory_space<vmem>>, %arg4: memref<1x256xf32, #tpu.memory_space<vmem>>, %arg5: memref<16x256xf32, #tpu.memory_space<vmem>>) attributes {dimension_semantics = [#tpu.dimension_semantics<parallel>, #tpu.dimension_semantics<parallel>], iteration_bounds = array<i64: 1, 1>, scalar_prefetch = 0 : i64, scratch_operands = 0 : i64, tpu.core_type = #tpu.core_type<tc>, window_params = [{transform_indices = @transform_0, window_bounds = array<i64: 16, 32>}, {transform_indices = @transform_1, window_bounds = array<i64: 32, 256>}, {transform_indices = @transform_2, window_bounds = array<i64: 1, 256>}, {transform_indices = @transform_3, window_bounds = array<i64: 16, 256>}]} {
    %c0 = arith.constant 0 : index
    %c0_0 = arith.constant 0 : index
    %0 = vector.load %arg2[%c0, %c0_0] : memref<16x32xf32, #tpu.memory_space<vmem>>, vector<16x32xf32>
    %c0_1 = arith.constant 0 : index
    %c0_2 = arith.constant 0 : index
    %1 = vector.load %arg3[%c0_1, %c0_2] : memref<32x256xf32, #tpu.memory_space<vmem>>, vector<32x256xf32>
    %cst = arith.constant dense<0.000000e+00> : vector<16x256xf32>
    %2 = tpu.matmul %0, %1, %cst {dimension_numbers = #tpu.dot_dimension_numbers<[1], [0], [0], [1], [0, 0, 1, 1], [], []>} : vector<16x32xf32>, vector<32x256xf32>, vector<16x256xf32> -> vector<16x256xf32>
    %c0_3 = arith.constant 0 : index
    %c0_4 = arith.constant 0 : index
    %3 = vector.load %arg4[%c0_3, %c0_4] : memref<1x256xf32, #tpu.memory_space<vmem>>, vector<1x256xf32>
    %4 = vector.broadcast %3 : vector<1x256xf32> to vector<16x256xf32>
    %5 = arith.addf %2, %4 : vector<16x256xf32>
    %c0_5 = arith.constant 0 : index
    %c0_6 = arith.constant 0 : index
    %6 = vector.load %arg5[%c0_5, %c0_6] : memref<16x256xf32, #tpu.memory_space<vmem>>, vector<16x256xf32>
    tpu.vector_store %arg5[%c0_5, %c0_6], %5 {strides = array<i32>} : memref<16x256xf32, #tpu.memory_space<vmem>>, vector<16x256xf32>,
    return
  }
  func.func @transform_0(%arg0: i32, %arg1: i32) -> (i32, i32) {
    %c0_i32 = arith.constant 0 : i32
    %c0_i32_0 = arith.constant 0 : i32
    return %arg1, %c0_i32 : i32, i32
  }
  func.func @transform_1(%arg0: i32, %arg1: i32) -> (i32, i32) {
    %c0_i32 = arith.constant 0 : i32
    %c0_i32_0 = arith.constant 0 : i32
    return %c0_i32, %arg0 : i32, i32
  }
  func.func @transform_2(%arg0: i32, %arg1: i32) -> (i32, i32) {
    %c0_i32 = arith.constant 0 : i32
    %c0_i32_0 = arith.constant 0 : i32
    return %c0_i32, %arg0 : i32, i32
  }
  func.func @transform_3(%arg0: i32, %arg1: i32) -> (i32, i32) {
    %c0_i32 = arith.constant 0 : i32
    return %arg1, %arg0 : i32, i32
  }
}

</mosaic_0001>

<llo_original>
// kernel: tpu_custom_call.1
$region0: #{tpu_custom_call.1}
  #allocation0 [shape = 'u32[]', space=smem, size = 0x4, offset = 0x4, fixed_abs, tag = 'smem constant byte address 0x4 - core index']
  #allocation1 [shape = 'u32[72,128]{1,0:T(1,128)}', space=vmem, size = 0x9000, scoped, tag = 'internal scratch']
  %s0 = inlined_call_operand.hbm [shape: f32[16,32], index: 0, kind: input, shape index: {}]
  %s1 = inlined_call_operand.hbm [shape: f32[32,256], index: 1, kind: input, shape index: {}]
  %s2 = inlined_call_operand.hbm [shape: f32[1,256], index: 2, kind: input, shape index: {}]
  %s3 = inlined_call_operand.hbm [shape: f32[16,256], index: 3, kind: output, shape index: {}]
  %s4 = sld [smem:[#allocation0]]
  $region34: #{tpu_custom_call.1} parent=0
    _
  %s6 = ssub.s32 1, %s4
  %s7 = scalar_select 0, %s6, %s4
  $region1: #{tpu_custom_call.1} parent=0
    #allocation2 [shape = 'u8[8192]{0}', space=vmem, size = 0x2000, scoped, tag = 'input window, operand 0, single buffered']
    #allocation3 [shape = 's32[1]{0}', space=sflag, size = 0x4, scoped, tag = 'scoped memory for tpu_custom_call.1']
    #allocation4 [shape = 's32[1]{0}', space=sflag, size = 0x4, scoped, tag = 'scoped memory for tpu_custom_call.1']
    #allocation5 [shape = 'u8[32768]{0}', space=vmem, size = 0x8000, scoped, tag = 'input window, operand 1, single buffered']
    #allocation6 [shape = 's32[1]{0}', space=sflag, size = 0x4, scoped, tag = 'scoped memory for tpu_custom_call.1']
    #allocation7 [shape = 'u8[1024]{0}', space=vmem, size = 0x400, scoped, tag = 'input window, operand 2, single buffered']
    #allocation8 [shape = 'u8[16384]{0}', space=vmem, size = 0x4000, scoped, tag = 'output window, operand 0, single buffered']
    %8 = vsyncpa [#allocation3], 0
    %9 = vsyncpa [#allocation6], 0
    %10 = vsyncpa [#allocation4], 0
    // Predicated region
    $region2: #{tpu_custom_call.1} parent=1 // pred_check
      _
    $region3: #{tpu_custom_call.1} parent=1 // pred_check_branch
      %12 = sbr.rel (0) target = $region5
    $region4: #{tpu_custom_call.1} parent=1 // pred_region
      %14 = vsyncadd [#allocation3], 0
      %s15 = sshll.u32 %s0, 4
      %s16 = int_to_ptr.hbm [resolvable:$true] %s15
      %s17 = sshll.u32 [#allocation2], 4
      %s18 = int_to_ptr.vmem [resolvable:$true] %s17
      %23 = dma.hbm_to_vmem [thread:$0]  %s16, 256, %s18, [#allocation3], 128, 128, 8
    $region5: #{tpu_custom_call.1} parent=1 // pred_fallthru
      _
    // Predicated region
    $region6: #{tpu_custom_call.1} parent=1 // pred_check
      _
    $region7: #{tpu_custom_call.1} parent=1 // pred_check_branch
      %25 = sbr.rel (0) target = $region9
    $region8: #{tpu_custom_call.1} parent=1 // pred_region
      %27 = vsyncadd [#allocation6], 0
      %s28 = sshll.u32 %s1, 4
      %s29 = int_to_ptr.hbm [resolvable:$true] %s28
      %s30 = sshll.u32 [#allocation5], 4
      %s31 = int_to_ptr.vmem [resolvable:$true] %s30
      %36 = dma.hbm_to_vmem [thread:$0]  %s29, 1024, %s31, [#allocation6], 256, 256, 16
    $region9: #{tpu_custom_call.1} parent=1 // pred_fallthru
      _
    // Predicated region
    $region10: #{tpu_custom_call.1} parent=1 // pred_check
      _
    $region11: #{tpu_custom_call.1} parent=1 // pred_check_branch
      %38 = sbr.rel (0) target = $region13
    $region12: #{tpu_custom_call.1} parent=1 // pred_region
      %40 = vsyncadd [#allocation6], 0
      %s42 = sshll.u32 %s2, 4
      %s43 = int_to_ptr.hbm [resolvable:$true] %s42
      %s44 = sshll.u32 [#allocation7], 4
      %s45 = int_to_ptr.vmem [resolvable:$true] %s44
      %47 = dma.hbm_to_vmem [thread:$0]  %s43, 32, %s45, [#allocation6]
    $region13: #{tpu_custom_call.1} parent=1 // pred_fallthru
      _
    // Predicated region
    $region14: #{tpu_custom_call.1} parent=1 // pred_check
      _
    $region15: #{tpu_custom_call.1} parent=1 // pred_check_branch
      %49 = sbr.rel (0) target = $region17
    $region16: #{tpu_custom_call.1} parent=1 // pred_region
      %51 = dma.done [#allocation3], 256
    $region17: #{tpu_custom_call.1} parent=1 // pred_fallthru
      _
    // Predicated region
    $region18: #{tpu_custom_call.1} parent=1 // pred_check
      _
    $region19: #{tpu_custom_call.1} parent=1 // pred_check_branch
      %53 = sbr.rel (0) target = $region21
    $region20: #{tpu_custom_call.1} parent=1 // pred_region
      %55 = dma.done [#allocation6], 1024
    $region21: #{tpu_custom_call.1} parent=1 // pred_fallthru
      _
    // Predicated region
    $region22: #{tpu_custom_call.1} parent=1 // pred_check
      _
    $region23: #{tpu_custom_call.1} parent=1 // pred_check_branch
      %57 = sbr.rel (0) target = $region25
    $region24: #{tpu_custom_call.1} parent=1 // pred_region
      %59 = dma.done [#allocation6], 32
    $region25: #{tpu_custom_call.1} parent=1 // pred_fallthru
      _
    %v60 = vld [vmem:[#allocation2] sm:$0xff]
    %v61 = vld [vmem:[#allocation2 + $0x8] sm:$0xff]
    %v62 = vld [vmem:[#allocation5] sm:$0xff]
    %v63 = vld [vmem:[#allocation5 + $0x8] sm:$0xff]
    %v64 = vld [vmem:[#allocation5 + $0x10] sm:$0xff]
    %v65 = vld [vmem:[#allocation5 + $0x18] sm:$0xff]
    %v66 = vld [vmem:[#allocation5 + $0x20] sm:$0xff]
    %v67 = vld [vmem:[#allocation5 + $0x28] sm:$0xff]
    %v68 = vld [vmem:[#allocation5 + $0x30] sm:$0xff]
    %v69 = vld [vmem:[#allocation5 + $0x38] sm:$0xff]
    %v70 = vld [vmem:[#allocation7] sm:$0x3]
    %v72 = vperm.slane %v70, 0
    %v73 = vperm.slane %v70, 1
    %vm76 = vcmask 261120
    %v78 = vsel %vm76, %v60, 0
    %v81 = vsel %vm76, %v61, 0
    %83 = vmatpush.msra.mxu0 0.0
    %84 = vmatpush.msra.mxu0 0.0
    %85 = vmatpush.msra.mxu0 0.0
    %86 = vmatpush.msra.mxu0 0.0
    %87 = vmatpush.msra.mxu0 0.0
    %88 = vmatpush.msra.mxu0 0.0
    %89 = vmatpush.msra.mxu0 0.0
    %90 = vmatpush.msra.mxu0 0.0
    %91 = vmatpush.msra.mxu0 0.0
    %92 = vmatpush.msra.mxu0 0.0
    %93 = vmatpush.msra.mxu0 0.0
    %94 = vmatpush.msra.mxu0 0.0
    %95 = vmatpush.msra.mxu0 %v68
    %96 = vmatpush.msra.mxu0 %v66
    %97 = vmatpush.msra.mxu0 %v64
    %98 = vmatpush.msra.mxu0 %v62
    %99 = vmatmul.f32.gmra.mxu0 %v78
    %v100 = vpop.f32.mrf.mxu0
    %v101 = vadd.f32 %v72, %v100
    %102 = vmatmul.f32.gmra.mxu0 %v81
    %v103 = vpop.f32.mrf.mxu0
    %v104 = vadd.f32 %v72, %v103
    %105 = vdwg.mxu0
    %106 = vmatpush.msra.mxu0 0.0
    %107 = vmatpush.msra.mxu0 0.0
    %108 = vmatpush.msra.mxu0 0.0
    %109 = vmatpush.msra.mxu0 0.0
    %110 = vmatpush.msra.mxu0 0.0
    %111 = vmatpush.msra.mxu0 0.0
    %112 = vmatpush.msra.mxu0 0.0
    %113 = vmatpush.msra.mxu0 0.0
    %114 = vmatpush.msra.mxu0 0.0
    %115 = vmatpush.msra.mxu0 0.0
    %116 = vmatpush.msra.mxu0 0.0
    %117 = vmatpush.msra.mxu0 0.0
    %118 = vmatpush.msra.mxu0 %v69
    %119 = vmatpush.msra.mxu0 %v67
    %120 = vmatpush.msra.mxu0 %v65
    %121 = vmatpush.msra.mxu0 %v63
    %122 = vmatmul.f32.gmra.mxu0 %v78
    %v123 = vpop.f32.mrf.mxu0
    %v124 = vadd.f32 %v73, %v123
    %125 = vmatmul.f32.gmra.mxu0 %v81
    %v126 = vpop.f32.mrf.mxu0
    %v127 = vadd.f32 %v73, %v126
    %128 = vdwg.mxu0
    %129 = vst [vmem:[#allocation8] sm:$0xff] %v101
    %130 = vst [vmem:[#allocation8 + $0x8] sm:$0xff] %v124
    %131 = vst [vmem:[#allocation8 + $0x10] sm:$0xff] %v104
    %132 = vst [vmem:[#allocation8 + $0x18] sm:$0xff] %v127
    // Predicated region
    $region26: #{tpu_custom_call.1} parent=1 // pred_check
      _
    $region27: #{tpu_custom_call.1} parent=1 // pred_check_branch
      %134 = sbr.rel (0) target = $region29
    $region28: #{tpu_custom_call.1} parent=1 // pred_region
      %136 = vsyncadd [#allocation4], 0
      %s137 = sshll.u32 [#allocation8], 4
      %s138 = int_to_ptr.vmem [resolvable:$true] %s137
      %s139 = sshll.u32 %s3, 4
      %s140 = int_to_ptr.hbm [resolvable:$true] %s139
      %145 = dma.vmem_to_hbm [thread:$0]  %s138, 512, %s140, [#allocation4], 256, 256, 16
    $region29: #{tpu_custom_call.1} parent=1 // pred_fallthru
      _
    // Predicated region
    $region30: #{tpu_custom_call.1} parent=1 // pred_check
      _
    $region31: #{tpu_custom_call.1} parent=1 // pred_check_branch
      %147 = sbr.rel (0) target = $region33
    $region32: #{tpu_custom_call.1} parent=1 // pred_region
      %149 = dma.done [#allocation4], 512
    $region33: #{tpu_custom_call.1} parent=1 // pred_fallthru
      _
    %150 = vsyncpa [#allocation3], 1
    %151 = vsyncpa [#allocation6], 1
    %152 = vsyncpa [#allocation4], 1

</llo_original>
